<compile_context>
chip_gen: v5e
topology: v5e:2x2
jax: 0.10.0
libtpu: 0.0.40
codegen_flags: <defaults>
</compile_context>

<pallas_src>
import functools

import jax
import jax.numpy as jnp
from jax.experimental import pallas as pl
from jax.experimental.pallas import tpu as pltpu


def _round_up(x, m):
    return (x + m - 1) // m * m


def _elementwise_dtype():
    """bf16 elementwise on chips with bf16 VPU/EUP (v6e/v7x); f32 elsewhere."""
    try:
        kind = jax.devices()[0].device_kind.lower()
    except Exception:  # pragma: no cover - defensive
        return jnp.float32
    if ("v6" in kind) or ("v7" in kind) or ("7x" in kind):
        return jnp.bfloat16
    return jnp.float32


def _mish(h, ew_dtype):
    """mish(h) = min(h * tanh(softplus(h)), 6).

    tanh(softplus(h)) = ((1+e^h)^2 - 1)/((1+e^h)^2 + 1) = n/(n+2),
    n = e^h*(e^h+2).  One EUP exp + one exact divide, no 1+eps cancellation,
    so it is safe to evaluate in bf16.  e^h clamped at e^20 (result is clamped
    to 6 for such h anyway); for very negative h, n -> 0 and the result -> 0
    with no NaN/Inf hazard.
    """
    x = h.astype(ew_dtype)
    t = jnp.exp(jnp.minimum(x, 20.0))
    n = t * (t + 2.0)
    tanh_sp = n / (n + 2.0)
    return jnp.minimum(x * tanh_sp, 6.0)


def soft_q_kernel(s_ref, a_ref,
                  w1s_ref, w1a_ref, b1_ref,
                  w2_ref, b2_ref,
                  w23_ref, b23_ref,
                  w3t_ref, b3_ref,
                  out_ref, *, ew_dtype):
    """All four linear layers + mish fused; one (tb, ...) batch tile."""
    # Layer 1: split matmul replaces the wrapper concat (same f32 accumulator).
    h = jnp.dot(s_ref[...].astype(jnp.bfloat16), w1s_ref[...],
                preferred_element_type=jnp.float32)
    h = h + jnp.dot(a_ref[...].astype(jnp.bfloat16), w1a_ref[...],
                    preferred_element_type=jnp.float32)
    h = _mish(h + b1_ref[...], ew_dtype)

    h = _mish(jnp.dot(h.astype(jnp.bfloat16), w2_ref[...],
                      preferred_element_type=jnp.float32) + b2_ref[...], ew_dtype)

    h = _mish(jnp.dot(h.astype(jnp.bfloat16), w23_ref[...],
                      preferred_element_type=jnp.float32) + b23_ref[...], ew_dtype)

    # Final layer emitted directly in lane-major layout: contract w3^T (8, Hp)
    # (8 replicated rows) against h (tb, Hp) over Hp -> (8, tb).  Row 0 is q
    # for this batch tile; the (8, tb) block keeps the store lane-dense and
    # (8,128)-rule compliant while writing 16x fewer bytes than the old slab.
    q = jax.lax.dot_general(
        w3t_ref[...], h.astype(jnp.bfloat16),
        dimension_numbers=(((1,), (1,)), ((), ())),
        preferred_element_type=jnp.float32)
    out_ref[...] = (q + b3_ref[...]).astype(out_ref.dtype)


def _resident_spec(arr):
    """Full-array block whose index is constant across the grid -> stays in VMEM."""
    ndim = arr.ndim
    return pl.BlockSpec(arr.shape, lambda *_: (0,) * ndim)


@functools.partial(jax.jit, static_argnames=("tile_b",))
def soft_q_forward(state, action, params, *, tile_b=512):
    """SoftQNetwork forward.  state: (B, num_inputs), action: (B, num_actions)."""
    batch, num_inputs = state.shape
    num_actions = action.shape[1]
    hp = params["w2"].shape[0]

    # Batch tiling: big tiles on the single-TC gens, but >= 2 lane-dense tiles
    # once batch >= 256 so the "parallel" axis can shard across v7x's 2 TCs.
    tile_b = max(128, _round_up(tile_b, 128))
    if batch < 256:
        tb = _round_up(max(batch, 8), 8)
    elif batch >= 2 * tile_b:
        tb = tile_b
    else:
        tb = _round_up(pl.cdiv(batch, 2), 128)
    n_tiles = pl.cdiv(batch, tb)
    assert n_tiles == 1 or tb % 128 == 0

    ew_dtype = _elementwise_dtype()

    weight_args = (
        params["w1s"], params["w1a"], params["b1"],
        params["w2"], params["b2"],
        params["w23"], params["b23"],
        params["w3t"], params["b3"],
    )

    # Explicit scoped-VMEM budget: 2x resident weights (default double
    # buffering), 2x the per-tile in/out blocks, plus intermediate headroom.
    weight_bytes = sum(int(w.size) * w.dtype.itemsize for w in weight_args)
    tile_io_bytes = tb * (num_inputs + num_actions) * 4 + 8 * tb * 4
    vmem_limit = int(min(2 * weight_bytes + 2 * tile_io_bytes
                         + 8 * tb * hp * 4 + (8 << 20), 100 << 20))

    out = pl.pallas_call(
        functools.partial(soft_q_kernel, ew_dtype=ew_dtype),
        out_shape=jax.ShapeDtypeStruct((8, n_tiles * tb), jnp.float32),
        grid=(n_tiles,),
        in_specs=[
            pl.BlockSpec((tb, num_inputs), lambda i: (i, 0)),
            pl.BlockSpec((tb, num_actions), lambda i: (i, 0)),
            *[_resident_spec(w) for w in weight_args],
        ],
        out_specs=pl.BlockSpec((8, tb), lambda i: (0, i)),
        compiler_params=pltpu.CompilerParams(
            dimension_semantics=("parallel",),
            vmem_limit_bytes=vmem_limit),
    )(state, action, *weight_args)

    # Real q is row 0; columns beyond `batch` (partial last tile) are garbage
    # and must always be sliced off here (never reduced over).
    return out[0, :batch, None]


def init_params(key, num_inputs, num_actions, hidden_size, init_w=0.003):
    """uniform(-init_w, init_w) init matching the PyTorch module, packed into
    the kernel layout: weights stored (in, out) = PyTorch weight.T, hidden dim
    zero-padded to 128 lanes, MXU operands bf16, biases f32.  Returns
    (kernel_params, raw_f32_params_for_reference)."""
    hp = _round_up(hidden_size, 128)
    ks = jax.random.split(key, 8)
    u = lambda k, shape: jax.random.uniform(
        k, shape, jnp.float32, minval=-init_w, maxval=init_w)

    w1 = u(ks[0], (num_inputs + num_actions, hidden_size))
    b1 = u(ks[1], (hidden_size,))
    w2 = u(ks[2], (hidden_size, hidden_size))
    b2 = u(ks[3], (hidden_size,))
    w23 = u(ks[4], (hidden_size, hidden_size))
    b23 = u(ks[5], (hidden_size,))
    w3 = u(ks[6], (hidden_size, 1))
    b3 = u(ks[7], (1,))

    def pad2(w, rows, cols):
        return jnp.pad(w, ((0, rows - w.shape[0]), (0, cols - w.shape[1])))

    def pad_bias(b, cols):
        return jnp.pad(b, (0, cols - b.shape[0]))[None, :]  # (1, cols) f32

    # TODO(synk): SAC twin critics could stack Q1/Q2 weights along out_features
    # to amortize launch cost; out of scope for this single-module port.
    kernel_params = {
        "w1s": pad2(w1[:num_inputs], num_inputs, hp).astype(jnp.bfloat16),
        "w1a": pad2(w1[num_inputs:], num_actions, hp).astype(jnp.bfloat16),
        "b1":  pad_bias(b1, hp),
        "w2":  pad2(w2, hp, hp).astype(jnp.bfloat16),
        "b2":  pad_bias(b2, hp),
        "w23": pad2(w23, hp, hp).astype(jnp.bfloat16),
        "b23": pad_bias(b23, hp),
        # Final layer stored transposed (1, hidden) -> (1, hp) -> replicated to
        # 8 sublane rows so the kernel's NT dot fills a full (8, tb) out block.
        "w3t": jnp.tile(pad2(w3.T, 1, hp), (8, 1)).astype(jnp.bfloat16),
        "b3":  b3.reshape(1, 1),
    }
    raw = {"w1": w1, "b1": b1, "w2": w2, "b2": b2,
           "w23": w23, "b23": b23, "w3": w3, "b3": b3}
    return kernel_params, raw


def _reference_forward(state, action, raw):
    """Pure-JAX reference with the same bf16-operand / f32-accumulate recipe."""
    def lin(x, w, b):
        return jnp.dot(x.astype(jnp.bfloat16), w.astype(jnp.bfloat16),
                       preferred_element_type=jnp.float32) + b
    mish = lambda h: jnp.minimum(h * jnp.tanh(jax.nn.softplus(h)), 6.0)
    x = jnp.concatenate([state, action], axis=1)
    h = mish(lin(x, raw["w1"], raw["b1"]))
    h = mish(lin(h, raw["w2"], raw["b2"]))
    h = mish(lin(h, raw["w23"], raw["b23"]))
    return lin(h, raw["w3"], raw["b3"])


if __name__ == "__main__":
    num_inputs, num_actions, hidden_size = 12, 4, 32
    batch = 8

    key = jax.random.PRNGKey(0)
    k_params, k_state, k_action = jax.random.split(key, 3)

    params, raw = init_params(k_params, num_inputs, num_actions, hidden_size)
    state = jax.random.normal(k_state, (batch, num_inputs), dtype=jnp.float32)
    action = jax.random.normal(k_action, (batch, num_actions), dtype=jnp.float32)

    q = soft_q_forward(state, action, params)
    jax.block_until_ready(q)

    q_ref = _reference_forward(state, action, raw)
    assert q.shape == (batch, 1), q.shape
    assert jnp.allclose(q, q_ref, atol=2e-4, rtol=2e-3), (q, q_ref)

    print("KERNEL_OK")
</pallas_src>

<mosaic_0001>
module attributes {stable_mosaic.version = 11 : i64} {
  func.func @soft_q_kernel(%arg0: i32, %arg1: memref<8x12xf32, #tpu.memory_space<vmem>>, %arg2: memref<8x4xf32, #tpu.memory_space<vmem>>, %arg3: memref<12x128xbf16, #tpu.memory_space<vmem>>, %arg4: memref<4x128xbf16, #tpu.memory_space<vmem>>, %arg5: memref<1x128xf32, #tpu.memory_space<vmem>>, %arg6: memref<128x128xbf16, #tpu.memory_space<vmem>>, %arg7: memref<1x128xf32, #tpu.memory_space<vmem>>, %arg8: memref<128x128xbf16, #tpu.memory_space<vmem>>, %arg9: memref<1x128xf32, #tpu.memory_space<vmem>>, %arg10: memref<8x128xbf16, #tpu.memory_space<vmem>>, %arg11: memref<1x1xf32, #tpu.memory_space<vmem>>, %arg12: memref<8x8xf32, #tpu.memory_space<vmem>>) attributes {dimension_semantics = [#tpu.dimension_semantics<parallel>], iteration_bounds = array<i64: 1>, scalar_prefetch = 0 : i64, scratch_operands = 0 : i64, tpu.core_type = #tpu.core_type<tc>, window_params = [{transform_indices = @transform_0, window_bounds = array<i64: 8, 12>}, {transform_indices = @transform_1, window_bounds = array<i64: 8, 4>}, {pipeline_mode = #tpu.pipeline_mode<synchronous>, transform_indices = @transform_2, window_bounds = array<i64: 12, 128>}, {pipeline_mode = #tpu.pipeline_mode<synchronous>, transform_indices = @transform_3, window_bounds = array<i64: 4, 128>}, {pipeline_mode = #tpu.pipeline_mode<synchronous>, transform_indices = @transform_4, window_bounds = array<i64: 1, 128>}, {pipeline_mode = #tpu.pipeline_mode<synchronous>, transform_indices = @transform_5, window_bounds = array<i64: 128, 128>}, {pipeline_mode = #tpu.pipeline_mode<synchronous>, transform_indices = @transform_6, window_bounds = array<i64: 1, 128>}, {pipeline_mode = #tpu.pipeline_mode<synchronous>, transform_indices = @transform_7, window_bounds = array<i64: 128, 128>}, {pipeline_mode = #tpu.pipeline_mode<synchronous>, transform_indices = @transform_8, window_bounds = array<i64: 1, 128>}, {pipeline_mode = #tpu.pipeline_mode<synchronous>, transform_indices = @transform_9, window_bounds = array<i64: 8, 128>}, {pipeline_mode = #tpu.pipeline_mode<synchronous>, transform_indices = @transform_10, window_bounds = array<i64: 1, 1>}, {transform_indices = @transform_11, window_bounds = array<i64: 8, 8>}]} {
    %c0 = arith.constant 0 : index
    %c0_0 = arith.constant 0 : index
    %0 = vector.load %arg1[%c0, %c0_0] : memref<8x12xf32, #tpu.memory_space<vmem>>, vector<8x12xf32>
    %1 = arith.truncf %0 : vector<8x12xf32> to vector<8x12xbf16>
    %c0_1 = arith.constant 0 : index
    %c0_2 = arith.constant 0 : index
    %2 = vector.load %arg3[%c0_1, %c0_2] : memref<12x128xbf16, #tpu.memory_space<vmem>>, vector<12x128xbf16>
    %cst = arith.constant dense<0.000000e+00> : vector<8x128xf32>
    %3 = tpu.matmul %1, %2, %cst {dimension_numbers = #tpu.dot_dimension_numbers<[1], [0], [0], [1], [0, 0, 1, 1], [], []>} : vector<8x12xbf16>, vector<12x128xbf16>, vector<8x128xf32> -> vector<8x128xf32>
    %c0_3 = arith.constant 0 : index
    %c0_4 = arith.constant 0 : index
    %4 = vector.load %arg2[%c0_3, %c0_4] : memref<8x4xf32, #tpu.memory_space<vmem>>, vector<8x4xf32>
    %5 = arith.truncf %4 : vector<8x4xf32> to vector<8x4xbf16>
    %c0_5 = arith.constant 0 : index
    %c0_6 = arith.constant 0 : index
    %6 = vector.load %arg4[%c0_5, %c0_6] : memref<4x128xbf16, #tpu.memory_space<vmem>>, vector<4x128xbf16>
    %cst_7 = arith.constant dense<0.000000e+00> : vector<8x128xf32>
    %7 = tpu.matmul %5, %6, %cst_7 {dimension_numbers = #tpu.dot_dimension_numbers<[1], [0], [0], [1], [0, 0, 1, 1], [], []>} : vector<8x4xbf16>, vector<4x128xbf16>, vector<8x128xf32> -> vector<8x128xf32>
    %8 = arith.addf %3, %7 : vector<8x128xf32>
    %c0_8 = arith.constant 0 : index
    %c0_9 = arith.constant 0 : index
    %9 = vector.load %arg5[%c0_8, %c0_9] : memref<1x128xf32, #tpu.memory_space<vmem>>, vector<1x128xf32>
    %10 = vector.broadcast %9 : vector<1x128xf32> to vector<8x128xf32>
    %11 = arith.addf %8, %10 : vector<8x128xf32>
    %cst_10 = arith.constant 2.000000e+01 : f32
    %12 = vector.broadcast %cst_10 : f32 to vector<8x128xf32>
    %13 = arith.minimumf %11, %12 : vector<8x128xf32>
    %14 = math.exp %13 : vector<8x128xf32>
    %cst_11 = arith.constant 2.000000e+00 : f32
    %15 = vector.broadcast %cst_11 : f32 to vector<8x128xf32>
    %16 = arith.addf %14, %15 : vector<8x128xf32>
    %17 = arith.mulf %14, %16 : vector<8x128xf32>
    %cst_12 = arith.constant 2.000000e+00 : f32
    %18 = vector.broadcast %cst_12 : f32 to vector<8x128xf32>
    %19 = arith.addf %17, %18 : vector<8x128xf32>
    %20 = arith.divf %17, %19 : vector<8x128xf32>
    %21 = arith.mulf %11, %20 : vector<8x128xf32>
    %cst_13 = arith.constant 6.000000e+00 : f32
    %22 = vector.broadcast %cst_13 : f32 to vector<8x128xf32>
    %23 = arith.minimumf %21, %22 : vector<8x128xf32>
    %24 = arith.truncf %23 : vector<8x128xf32> to vector<8x128xbf16>
    %c0_14 = arith.constant 0 : index
    %c0_15 = arith.constant 0 : index
    %25 = vector.load %arg6[%c0_14, %c0_15] : memref<128x128xbf16, #tpu.memory_space<vmem>>, vector<128x128xbf16>
    %cst_16 = arith.constant dense<0.000000e+00> : vector<8x128xf32>
    %26 = tpu.matmul %24, %25, %cst_16 {dimension_numbers = #tpu.dot_dimension_numbers<[1], [0], [0], [1], [0, 0, 1, 1], [], []>} : vector<8x128xbf16>, vector<128x128xbf16>, vector<8x128xf32> -> vector<8x128xf32>
    %c0_17 = arith.constant 0 : index
    %c0_18 = arith.constant 0 : index
    %27 = vector.load %arg7[%c0_17, %c0_18] : memref<1x128xf32, #tpu.memory_space<vmem>>, vector<1x128xf32>
    %28 = vector.broadcast %27 : vector<1x128xf32> to vector<8x128xf32>
    %29 = arith.addf %26, %28 : vector<8x128xf32>
    %cst_19 = arith.constant 2.000000e+01 : f32
    %30 = vector.broadcast %cst_19 : f32 to vector<8x128xf32>
    %31 = arith.minimumf %29, %30 : vector<8x128xf32>
    %32 = math.exp %31 : vector<8x128xf32>
    %cst_20 = arith.constant 2.000000e+00 : f32
    %33 = vector.broadcast %cst_20 : f32 to vector<8x128xf32>
    %34 = arith.addf %32, %33 : vector<8x128xf32>
    %35 = arith.mulf %32, %34 : vector<8x128xf32>
    %cst_21 = arith.constant 2.000000e+00 : f32
    %36 = vector.broadcast %cst_21 : f32 to vector<8x128xf32>
    %37 = arith.addf %35, %36 : vector<8x128xf32>
    %38 = arith.divf %35, %37 : vector<8x128xf32>
    %39 = arith.mulf %29, %38 : vector<8x128xf32>
    %cst_22 = arith.constant 6.000000e+00 : f32
    %40 = vector.broadcast %cst_22 : f32 to vector<8x128xf32>
    %41 = arith.minimumf %39, %40 : vector<8x128xf32>
    %42 = arith.truncf %41 : vector<8x128xf32> to vector<8x128xbf16>
    %c0_23 = arith.constant 0 : index
    %c0_24 = arith.constant 0 : index
    %43 = vector.load %arg8[%c0_23, %c0_24] : memref<128x128xbf16, #tpu.memory_space<vmem>>, vector<128x128xbf16>
    %cst_25 = arith.constant dense<0.000000e+00> : vector<8x128xf32>
    %44 = tpu.matmul %42, %43, %cst_25 {dimension_numbers = #tpu.dot_dimension_numbers<[1], [0], [0], [1], [0, 0, 1, 1], [], []>} : vector<8x128xbf16>, vector<128x128xbf16>, vector<8x128xf32> -> vector<8x128xf32>
    %c0_26 = arith.constant 0 : index
    %c0_27 = arith.constant 0 : index
    %45 = vector.load %arg9[%c0_26, %c0_27] : memref<1x128xf32, #tpu.memory_space<vmem>>, vector<1x128xf32>
    %46 = vector.broadcast %45 : vector<1x128xf32> to vector<8x128xf32>
    %47 = arith.addf %44, %46 : vector<8x128xf32>
    %cst_28 = arith.constant 2.000000e+01 : f32
    %48 = vector.broadcast %cst_28 : f32 to vector<8x128xf32>
    %49 = arith.minimumf %47, %48 : vector<8x128xf32>
    %50 = math.exp %49 : vector<8x128xf32>
    %cst_29 = arith.constant 2.000000e+00 : f32
    %51 = vector.broadcast %cst_29 : f32 to vector<8x128xf32>
    %52 = arith.addf %50, %51 : vector<8x128xf32>
    %53 = arith.mulf %50, %52 : vector<8x128xf32>
    %cst_30 = arith.constant 2.000000e+00 : f32
    %54 = vector.broadcast %cst_30 : f32 to vector<8x128xf32>
    %55 = arith.addf %53, %54 : vector<8x128xf32>
    %56 = arith.divf %53, %55 : vector<8x128xf32>
    %57 = arith.mulf %47, %56 : vector<8x128xf32>
    %cst_31 = arith.constant 6.000000e+00 : f32
    %58 = vector.broadcast %cst_31 : f32 to vector<8x128xf32>
    %59 = arith.minimumf %57, %58 : vector<8x128xf32>
    %c0_32 = arith.constant 0 : index
    %c0_33 = arith.constant 0 : index
    %60 = vector.load %arg10[%c0_32, %c0_33] : memref<8x128xbf16, #tpu.memory_space<vmem>>, vector<8x128xbf16>
    %61 = arith.truncf %59 : vector<8x128xf32> to vector<8x128xbf16>
    %cst_34 = arith.constant dense<0.000000e+00> : vector<8x8xf32>
    %62 = tpu.matmul %60, %61, %cst_34 {dimension_numbers = #tpu.dot_dimension_numbers<[1], [1], [0], [0], [0, 0, 1, 0], [], []>} : vector<8x128xbf16>, vector<8x128xbf16>, vector<8x8xf32> -> vector<8x8xf32>
    %c0_35 = arith.constant 0 : index
    %c0_36 = arith.constant 0 : index
    %63 = vector.load %arg11[%c0_35, %c0_36] : memref<1x1xf32, #tpu.memory_space<vmem>>, vector<1x1xf32>
    %64 = vector.broadcast %63 : vector<1x1xf32> to vector<8x8xf32>
    %65 = arith.addf %62, %64 : vector<8x8xf32>
    %c0_37 = arith.constant 0 : index
    %c0_38 = arith.constant 0 : index
    %66 = vector.load %arg12[%c0_37, %c0_38] : memref<8x8xf32, #tpu.memory_space<vmem>>, vector<8x8xf32>
    tpu.vector_store %arg12[%c0_37, %c0_38], %65 {strides = array<i32>} : memref<8x8xf32, #tpu.memory_space<vmem>>, vector<8x8xf32>,
    return
  }
  func.func @transform_0(%arg0: i32) -> (i32, i32) {
    %c0_i32 = arith.constant 0 : i32
    %c0_i32_0 = arith.constant 0 : i32
    return %arg0, %c0_i32 : i32, i32
  }
  func.func @transform_1(%arg0: i32) -> (i32, i32) {
    %c0_i32 = arith.constant 0 : i32
    %c0_i32_0 = arith.constant 0 : i32
    return %arg0, %c0_i32 : i32, i32
  }
  func.func @transform_2(%arg0: i32) -> (i32, i32) {
    %c0_i32 = arith.constant 0 : i32
    %c0_i32_0 = arith.constant 0 : i32
    %c0_i32_1 = arith.constant 0 : i32
    return %c0_i32, %c0_i32_0 : i32, i32
  }
  func.func @transform_3(%arg0: i32) -> (i32, i32) {
    %c0_i32 = arith.constant 0 : i32
    %c0_i32_0 = arith.constant 0 : i32
    %c0_i32_1 = arith.constant 0 : i32
    return %c0_i32, %c0_i32_0 : i32, i32
  }
  func.func @transform_4(%arg0: i32) -> (i32, i32) {
    %c0_i32 = arith.constant 0 : i32
    %c0_i32_0 = arith.constant 0 : i32
    %c0_i32_1 = arith.constant 0 : i32
    return %c0_i32, %c0_i32_0 : i32, i32
  }
  func.func @transform_5(%arg0: i32) -> (i32, i32) {
    %c0_i32 = arith.constant 0 : i32
    %c0_i32_0 = arith.constant 0 : i32
    %c0_i32_1 = arith.constant 0 : i32
    return %c0_i32, %c0_i32_0 : i32, i32
  }
  func.func @transform_6(%arg0: i32) -> (i32, i32) {
    %c0_i32 = arith.constant 0 : i32
    %c0_i32_0 = arith.constant 0 : i32
    %c0_i32_1 = arith.constant 0 : i32
    return %c0_i32, %c0_i32_0 : i32, i32
  }
  func.func @transform_7(%arg0: i32) -> (i32, i32) {
    %c0_i32 = arith.constant 0 : i32
    %c0_i32_0 = arith.constant 0 : i32
    %c0_i32_1 = arith.constant 0 : i32
    return %c0_i32, %c0_i32_0 : i32, i32
  }
  func.func @transform_8(%arg0: i32) -> (i32, i32) {
    %c0_i32 = arith.constant 0 : i32
    %c0_i32_0 = arith.constant 0 : i32
    %c0_i32_1 = arith.constant 0 : i32
    return %c0_i32, %c0_i32_0 : i32, i32
  }
  func.func @transform_9(%arg0: i32) -> (i32, i32) {
    %c0_i32 = arith.constant 0 : i32
    %c0_i32_0 = arith.constant 0 : i32
    %c0_i32_1 = arith.constant 0 : i32
    return %c0_i32, %c0_i32_0 : i32, i32
  }
  func.func @transform_10(%arg0: i32) -> (i32, i32) {
    %c0_i32 = arith.constant 0 : i32
    %c0_i32_0 = arith.constant 0 : i32
    %c0_i32_1 = arith.constant 0 : i32
    return %c0_i32, %c0_i32_0 : i32, i32
  }
  func.func @transform_11(%arg0: i32) -> (i32, i32) {
    %c0_i32 = arith.constant 0 : i32
    %c0_i32_0 = arith.constant 0 : i32
    return %c0_i32, %arg0 : i32, i32
  }
}

</mosaic_0001>

<llo_original>
// kernel: soft_q_forward.1
$region0: #{soft_q_forward.1}
  #allocation0 [shape = 'u32[]', space=smem, size = 0x4, offset = 0x4, fixed_abs, tag = 'smem constant byte address 0x4 - core index']
  #allocation1 [shape = 'u32[72,128]{1,0:T(1,128)}', space=vmem, size = 0x9000, scoped, tag = 'internal scratch']
  #allocation2 [shape = 'f32[1,1]{1,0:T(1,128)S(1)}', space=vmem, size = 0x200, scoped, tag = 'scoped memory for soft_q_forward.1']
  %s0 = inlined_call_operand.vmem [shape: f32[8,12], index: 0, kind: input, shape index: {}]
  %s1 = inlined_call_operand.vmem [shape: f32[8,4], index: 1, kind: input, shape index: {}]
  %s2 = inlined_call_operand.vmem [shape: bf16[12,128], index: 2, kind: input, shape index: {}]
  %s3 = inlined_call_operand.hbm [shape: bf16[4,128], index: 3, kind: input, shape index: {}]
  %s4 = inlined_call_operand.hbm [shape: f32[1,128], index: 4, kind: input, shape index: {}]
  %s5 = inlined_call_operand.hbm [shape: bf16[128,128], index: 5, kind: input, shape index: {}]
  %s6 = inlined_call_operand.hbm [shape: f32[1,128], index: 6, kind: input, shape index: {}]
  %s7 = inlined_call_operand.hbm [shape: bf16[128,128], index: 7, kind: input, shape index: {}]
  %s8 = inlined_call_operand.hbm [shape: f32[1,128], index: 8, kind: input, shape index: {}]
  %s9 = inlined_call_operand.vmem [shape: bf16[8,128], index: 9, kind: input, shape index: {}]
  %s10 = inlined_call_operand.<no memory space> [shape: f32[1,1], index: 10, kind: input, shape index: {}]
  %s11 = inlined_call_operand.vmem [shape: f32[8,8], index: 11, kind: output, shape index: {}]
  %s12 = sld [smem:[#allocation0]]
  $region78: #{soft_q_forward.1} parent=0
    _
  %s14 = ssub.s32 1, %s12
  %s15 = scalar_select 0, %s14, %s12
  %v16 = vstv %s10
  %17 = vst [vmem:[#allocation2] sm:$0x1] %v16
  $region1: #{soft_q_forward.1} parent=0
    #allocation3 [shape = 'u8[1024]{0}', space=vmem, size = 0x400, scoped, tag = 'input window, operand 3, single buffered']
    #allocation4 [shape = 's32[1]{0}', space=sflag, size = 0x4, scoped, tag = 'scoped memory for soft_q_forward.1']
    #allocation5 [shape = 'u8[512]{0}', space=vmem, size = 0x400, scoped, tag = 'input window, operand 4, single buffered']
    #allocation6 [shape = 's32[1]{0}', space=sflag, size = 0x4, scoped, tag = 'scoped memory for soft_q_forward.1']
    #allocation7 [shape = 'u8[32768]{0}', space=vmem, size = 0x8000, scoped, tag = 'input window, operand 5, single buffered']
    #allocation8 [shape = 'u8[512]{0}', space=vmem, size = 0x400, scoped, tag = 'input window, operand 6, single buffered']
    #allocation9 [shape = 's32[1]{0}', space=sflag, size = 0x4, scoped, tag = 'scoped memory for soft_q_forward.1']
    #allocation10 [shape = 'u8[32768]{0}', space=vmem, size = 0x8000, scoped, tag = 'input window, operand 7, single buffered']
    #allocation11 [shape = 'u8[512]{0}', space=vmem, size = 0x400, scoped, tag = 'input window, operand 8, single buffered']
    #allocation12 [shape = 's32[1]{0}', space=sflag, size = 0x4, scoped, tag = 'scoped memory for soft_q_forward.1']
    %18 = vsyncpa [#allocation4], 0
    %19 = vsyncpa [#allocation6], 0
    %20 = vsyncpa [#allocation9], 0
    %21 = vsyncpa [#allocation12], 0
    // Predicated region
    $region2: #{soft_q_forward.1} parent=1 // pred_check
      _
    $region3: #{soft_q_forward.1} parent=1 // pred_check_branch
      %23 = sbr.rel (0) target = $region5
    $region4: #{soft_q_forward.1} parent=1 // pred_region
      _
    $region5: #{soft_q_forward.1} parent=1 // pred_fallthru
      _
    // Predicated region
    $region6: #{soft_q_forward.1} parent=1 // pred_check
      _
    $region7: #{soft_q_forward.1} parent=1 // pred_check_branch
      %25 = sbr.rel (0) target = $region9
    $region8: #{soft_q_forward.1} parent=1 // pred_region
      _
    $region9: #{soft_q_forward.1} parent=1 // pred_fallthru
      _
    // Predicated region
    $region10: #{soft_q_forward.1} parent=1 // pred_check
      _
    $region11: #{soft_q_forward.1} parent=1 // pred_check_branch
      %27 = sbr.rel (0) target = $region13
    $region12: #{soft_q_forward.1} parent=1 // pred_region
      _
    $region13: #{soft_q_forward.1} parent=1 // pred_fallthru
      _
    // Predicated region
    $region14: #{soft_q_forward.1} parent=1 // pred_check
      _
    $region15: #{soft_q_forward.1} parent=1 // pred_check_branch
      %29 = sbr.rel (0) target = $region17
    $region16: #{soft_q_forward.1} parent=1 // pred_region
      %31 = vsyncadd [#allocation4], 0
      %s33 = sshll.u32 %s3, 4
      %s34 = int_to_ptr.hbm [resolvable:$true] %s33
      %s35 = sshll.u32 [#allocation3], 4
      %s36 = int_to_ptr.vmem [resolvable:$true] %s35
      %38 = dma.hbm_to_vmem [thread:$0]  %s34, 32, %s36, [#allocation4]
    $region17: #{soft_q_forward.1} parent=1 // pred_fallthru
      _
    // Predicated region
    $region18: #{soft_q_forward.1} parent=1 // pred_check
      _
    $region19: #{soft_q_forward.1} parent=1 // pred_check_branch
      %40 = sbr.rel (0) target = $region21
    $region20: #{soft_q_forward.1} parent=1 // pred_region
      %42 = vsyncadd [#allocation6], 0
      %s44 = sshll.u32 %s4, 4
      %s45 = int_to_ptr.hbm [resolvable:$true] %s44
      %s46 = sshll.u32 [#allocation5], 4
      %s47 = int_to_ptr.vmem [resolvable:$true] %s46
      %49 = dma.hbm_to_vmem [thread:$0]  %s45, 16, %s47, [#allocation6]
    $region21: #{soft_q_forward.1} parent=1 // pred_fallthru
      _
    // Predicated region
    $region22: #{soft_q_forward.1} parent=1 // pred_check
      _
    $region23: #{soft_q_forward.1} parent=1 // pred_check_branch
      %51 = sbr.rel (0) target = $region25
    $region24: #{soft_q_forward.1} parent=1 // pred_region
      %53 = vsyncadd [#allocation6], 0
      %s54 = sshll.u32 %s5, 4
      %s55 = int_to_ptr.hbm [resolvable:$true] %s54
      %s56 = sshll.u32 [#allocation7], 4
      %s57 = int_to_ptr.vmem [resolvable:$true] %s56
      %62 = dma.hbm_to_vmem [thread:$0]  %s55, 1024, %s57, [#allocation6], 64, 64, 4
    $region25: #{soft_q_forward.1} parent=1 // pred_fallthru
      _
    // Predicated region
    $region26: #{soft_q_forward.1} parent=1 // pred_check
      _
    $region27: #{soft_q_forward.1} parent=1 // pred_check_branch
      %64 = sbr.rel (0) target = $region29
    $region28: #{soft_q_forward.1} parent=1 // pred_region
      %66 = vsyncadd [#allocation9], 0
      %s68 = sshll.u32 %s6, 4
      %s69 = int_to_ptr.hbm [resolvable:$true] %s68
      %s70 = sshll.u32 [#allocation8], 4
      %s71 = int_to_ptr.vmem [resolvable:$true] %s70
      %73 = dma.hbm_to_vmem [thread:$0]  %s69, 16, %s71, [#allocation9]
    $region29: #{soft_q_forward.1} parent=1 // pred_fallthru
      _
    // Predicated region
    $region30: #{soft_q_forward.1} parent=1 // pred_check
      _
    $region31: #{soft_q_forward.1} parent=1 // pred_check_branch
      %75 = sbr.rel (0) target = $region33
    $region32: #{soft_q_forward.1} parent=1 // pred_region
      %77 = vsyncadd [#allocation9], 0
      %s78 = sshll.u32 %s7, 4
      %s79 = int_to_ptr.hbm [resolvable:$true] %s78
      %s80 = sshll.u32 [#allocation10], 4
      %s81 = int_to_ptr.vmem [resolvable:$true] %s80
      %86 = dma.hbm_to_vmem [thread:$0]  %s79, 1024, %s81, [#allocation9], 64, 64, 4
    $region33: #{soft_q_forward.1} parent=1 // pred_fallthru
      _
    // Predicated region
    $region34: #{soft_q_forward.1} parent=1 // pred_check
      _
    $region35: #{soft_q_forward.1} parent=1 // pred_check_branch
      %88 = sbr.rel (0) target = $region37
    $region36: #{soft_q_forward.1} parent=1 // pred_region
      %90 = vsyncadd [#allocation12], 0
      %s92 = sshll.u32 %s8, 4
      %s93 = int_to_ptr.hbm [resolvable:$true] %s92
      %s94 = sshll.u32 [#allocation11], 4
      %s95 = int_to_ptr.vmem [resolvable:$true] %s94
      %97 = dma.hbm_to_vmem [thread:$0]  %s93, 16, %s95, [#allocation12]
    $region37: #{soft_q_forward.1} parent=1 // pred_fallthru
      _
    // Predicated region
    $region38: #{soft_q_forward.1} parent=1 // pred_check
      _
    $region39: #{soft_q_forward.1} parent=1 // pred_check_branch
      %99 = sbr.rel (0) target = $region41
    $region40: #{soft_q_forward.1} parent=1 // pred_region
      _
    $region41: #{soft_q_forward.1} parent=1 // pred_fallthru
      _
    // Predicated region
    $region42: #{soft_q_forward.1} parent=1 // pred_check
      _
    $region43: #{soft_q_forward.1} parent=1 // pred_check_branch
      %101 = sbr.rel (0) target = $region45
    $region44: #{soft_q_forward.1} parent=1 // pred_region
      _
    $region45: #{soft_q_forward.1} parent=1 // pred_fallthru
      _
    // Predicated region
    $region46: #{soft_q_forward.1} parent=1 // pred_check
      _
    $region47: #{soft_q_forward.1} parent=1 // pred_check_branch
      %103 = sbr.rel (0) target = $region49
    $region48: #{soft_q_forward.1} parent=1 // pred_region
      %105 = dma.done [#allocation4], 32
    $region49: #{soft_q_forward.1} parent=1 // pred_fallthru
      _
    // Predicated region
    $region50: #{soft_q_forward.1} parent=1 // pred_check
      _
    $region51: #{soft_q_forward.1} parent=1 // pred_check_branch
      %107 = sbr.rel (0) target = $region53
    $region52: #{soft_q_forward.1} parent=1 // pred_region
      %109 = dma.done [#allocation6], 16
    $region53: #{soft_q_forward.1} parent=1 // pred_fallthru
      _
    // Predicated region
    $region54: #{soft_q_forward.1} parent=1 // pred_check
      _
    $region55: #{soft_q_forward.1} parent=1 // pred_check_branch
      %111 = sbr.rel (0) target = $region57
    $region56: #{soft_q_forward.1} parent=1 // pred_region
      %113 = dma.done [#allocation6], 1024
    $region57: #{soft_q_forward.1} parent=1 // pred_fallthru
      _
    // Predicated region
    $region58: #{soft_q_forward.1} parent=1 // pred_check
      _
    $region59: #{soft_q_forward.1} parent=1 // pred_check_branch
      %115 = sbr.rel (0) target = $region61
    $region60: #{soft_q_forward.1} parent=1 // pred_region
      %117 = dma.done [#allocation9], 16
    $region61: #{soft_q_forward.1} parent=1 // pred_fallthru
      _
    // Predicated region
    $region62: #{soft_q_forward.1} parent=1 // pred_check
      _
    $region63: #{soft_q_forward.1} parent=1 // pred_check_branch
      %119 = sbr.rel (0) target = $region65
    $region64: #{soft_q_forward.1} parent=1 // pred_region
      %121 = dma.done [#allocation9], 1024
    $region65: #{soft_q_forward.1} parent=1 // pred_fallthru
      _
    // Predicated region
    $region66: #{soft_q_forward.1} parent=1 // pred_check
      _
    $region67: #{soft_q_forward.1} parent=1 // pred_check_branch
      %123 = sbr.rel (0) target = $region69
    $region68: #{soft_q_forward.1} parent=1 // pred_region
      %125 = dma.done [#allocation12], 16
    $region69: #{soft_q_forward.1} parent=1 // pred_fallthru
      _
    %v127 = vld [vmem:[%s0] sm:$0xff]
    %v128 = vpack.c.bf16 %v127, %v127
    %v129 = vld [vmem:[%s2] sm:$0xf]
    %v130 = vld [vmem:[%s2 + $0x4] sm:$0x3]
    %v131 = vld [vmem:[%s1] sm:$0xff]
    %v132 = vpack.c.bf16 %v131, %v131
    %v133 = vld [vmem:[#allocation3] sm:$0x3]
    %vm134 = vcmask 31744
    %v136 = vsel %vm134, %v132, 0
    %vm138 = vcmask 1041408
    %v140 = vsel %vm138, %v133, 0
    %142 = vmatpush.bf16.msra.mxu0 0
    %143 = vmatpush.bf16.msra.mxu0 0
    %144 = vmatpush.bf16.msra.mxu0 0
    %145 = vmatpush.bf16.msra.mxu0 0
    %146 = vmatpush.bf16.msra.mxu0 0
    %147 = vmatpush.bf16.msra.mxu0 0
    %148 = vmatpush.bf16.msra.mxu0 0
    %149 = vmatpush.bf16.msra.mxu0 %v140
    %150 = vmatmul.bf16.gmra.mxu0 %v136
    %v151 = vpop.f32.mrf.mxu0
    %v152 = vadd.f32 0.0, %v151
    %v153 = vpop.f32.mrf.mxu0
    %154 = vdwg.mxu0
    %v157 = vunpack.c.l.b16 %v129
    %v158 = vunpack.c.l.b16 %v130
    %v159 = vpack.c.b16 %v158, %v157
    %vm160 = vcmask 97280
    %v162 = vsel %vm160, %v128, 0
    %vm164 = vcmask 1045504
    %v166 = vsel %vm164, %v159, 0
    %168 = vmatpush.bf16.msra.mxu0 0
    %169 = vmatpush.bf16.msra.mxu0 0
    %170 = vmatpush.bf16.msra.mxu0 0
    %171 = vmatpush.bf16.msra.mxu0 0
    %172 = vmatpush.bf16.msra.mxu0 0
    %173 = vmatpush.bf16.msra.mxu0 0
    %174 = vmatpush.bf16.msra.mxu0 0
    %175 = vmatpush.bf16.msra.mxu0 %v166
    %176 = vmatmul.bf16.gmra.mxu0 %v162
    %v177 = vpop.f32.mrf.mxu0
    %v178 = vadd.f32 %v152, %v177
    %v179 = vpop.f32.mrf.mxu0
    %180 = vdwg.mxu0
    %v181 = vld [vmem:[#allocation5] sm:$0x1]
    %v183 = vperm.slane %v181, 0
    %v185 = vadd.f32 %v178, %v183
    %v186 = vmin.f32 %v185, 20.0
    %v187 = vmul.f32 %v186, 1.442695
    %v188 = vpow.pop %v187
    %v189 = vadd.f32 %v188, 2.0
    %v190 = vmul.f32 %v188, %v189
    %v191 = vadd.f32 %v190, 2.0
    %v192 = vrcp.pop %v191
    %v193 = vmul.f32 %v191, %v192
    %v194 = vsub.f32 1.0, %v193
    %v195 = vmul.f32 %v192, %v194
    %v196 = vadd.f32 %v192, %v195
    %vm197 = vweird.f32 %v191
    %vm198 = vweird.f32 %v192
    %vm199 = vmor %vm197, %vm198
    %v200 = vsel %vm199, %v192, %v196
    %v201 = vand.u32 2147483647, %v191
    %vm202 = vcmp.eq.f32.partialorder %v201, 8.507059e+37
    %v203 = vand.u32 %v191, 2147483648
    %v204 = vor.u32 1.1754944e-38, %v203
    %v205 = vsel %vm202, %v204, %v200
    %v206 = vmul.f32 %v190, %v205
    %v207 = vmul.f32 %v185, %v206
    %v208 = vmin.f32 %v207, 6.0
    %v209 = vpack.c.bf16 %v208, %v208
    %v210 = vld [vmem:[#allocation7] sm:$0xf]
    %v211 = vld [vmem:[#allocation7 + $0x4] sm:$0xf]
    %v212 = vld [vmem:[#allocation7 + $0x8] sm:$0xf]
    %v213 = vld [vmem:[#allocation7 + $0xc] sm:$0xf]
    %v214 = vld [vmem:[#allocation7 + $0x10] sm:$0xf]
    %v215 = vld [vmem:[#allocation7 + $0x14] sm:$0xf]
    %v216 = vld [vmem:[#allocation7 + $0x18] sm:$0xf]
    %v217 = vld [vmem:[#allocation7 + $0x1c] sm:$0xf]
    %v218 = vld [vmem:[#allocation7 + $0x20] sm:$0xf]
    %v219 = vld [vmem:[#allocation7 + $0x24] sm:$0xf]
    %v220 = vld [vmem:[#allocation7 + $0x28] sm:$0xf]
    %v221 = vld [vmem:[#allocation7 + $0x2c] sm:$0xf]
    %v222 = vld [vmem:[#allocation7 + $0x30] sm:$0xf]
    %v223 = vld [vmem:[#allocation7 + $0x34] sm:$0xf]
    %v224 = vld [vmem:[#allocation7 + $0x38] sm:$0xf]
    %v225 = vld [vmem:[#allocation7 + $0x3c] sm:$0xf]
    %v226 = vld [vmem:[#allocation8] sm:$0x1]
    %v228 = vperm.slane %v226, 0
    %v246 = vunpack.c.l.b16 %v210
    %v247 = vunpack.c.l.b16 %v211
    %v248 = vunpack.c.l.b16 %v212
    %v249 = vunpack.c.l.b16 %v213
    %v250 = vunpack.c.l.b16 %v214
    %v251 = vunpack.c.l.b16 %v215
    %v252 = vunpack.c.l.b16 %v216
    %v253 = vunpack.c.l.b16 %v217
    %v254 = vunpack.c.l.b16 %v218
    %v255 = vunpack.c.l.b16 %v219
    %v256 = vunpack.c.l.b16 %v220
    %v257 = vunpack.c.l.b16 %v221
    %v258 = vunpack.c.l.b16 %v222
    %v259 = vunpack.c.l.b16 %v223
    %v260 = vunpack.c.l.b16 %v224
    %v261 = vunpack.c.l.b16 %v225
    %v262 = vpack.c.b16 %v247, %v246
    %v263 = vpack.c.b16 %v249, %v248
    %v264 = vpack.c.b16 %v251, %v250
    %v265 = vpack.c.b16 %v253, %v252
    %v266 = vpack.c.b16 %v255, %v254
    %v267 = vpack.c.b16 %v257, %v256
    %v268 = vpack.c.b16 %v259, %v258
    %v269 = vpack.c.b16 %v261, %v260
    %278 = vmatpush.bf16.msra.mxu0 %v269
    %279 = vmatpush.bf16.msra.mxu0 %v268
    %280 = vmatpush.bf16.msra.mxu0 %v267
    %281 = vmatpush.bf16.msra.mxu0 %v266
    %282 = vmatpush.bf16.msra.mxu0 %v265
    %283 = vmatpush.bf16.msra.mxu0 %v264
    %284 = vmatpush.bf16.msra.mxu0 %v263
    %285 = vmatpush.bf16.msra.mxu0 %v262
    %286 = vmatmul.bf16.gmra.mxu0 %v209
    %v287 = vpop.f32.mrf.mxu0
    %v288 = vadd.f32 %v228, %v287
    %v289 = vpop.f32.mrf.mxu0
    %290 = vdwg.mxu0
    %v291 = vmin.f32 %v288, 20.0
    %v292 = vmul.f32 %v291, 1.442695
    %v293 = vpow.pop %v292
    %v294 = vadd.f32 %v293, 2.0
    %v295 = vmul.f32 %v293, %v294
    %v296 = vadd.f32 %v295, 2.0
    %v297 = vrcp.pop %v296
    %v298 = vmul.f32 %v296, %v297
    %v299 = vsub.f32 1.0, %v298
    %v300 = vmul.f32 %v297, %v299
    %v301 = vadd.f32 %v297, %v300
    %vm302 = vweird.f32 %v296
    %vm303 = vweird.f32 %v297
    %vm304 = vmor %vm302, %vm303
    %v305 = vsel %vm304, %v297, %v301
    %v306 = vand.u32 2147483647, %v296
    %vm307 = vcmp.eq.f32.partialorder %v306, 8.507059e+37
    %v308 = vand.u32 %v296, 2147483648
    %v309 = vor.u32 1.1754944e-38, %v308
    %v310 = vsel %vm307, %v309, %v305
    %v311 = vmul.f32 %v295, %v310
    %v312 = vmul.f32 %v288, %v311
    %v313 = vmin.f32 %v312, 6.0
    %v314 = vpack.c.bf16 %v313, %v313
    %v315 = vld [vmem:[#allocation10] sm:$0xf]
    %v316 = vld [vmem:[#allocation10 + $0x4] sm:$0xf]
    %v317 = vld [vmem:[#allocation10 + $0x8] sm:$0xf]
    %v318 = vld [vmem:[#allocation10 + $0xc] sm:$0xf]
    %v319 = vld [vmem:[#allocation10 + $0x10] sm:$0xf]
    %v320 = vld [vmem:[#allocation10 + $0x14] sm:$0xf]
    %v321 = vld [vmem:[#allocation10 + $0x18] sm:$0xf]
    %v322 = vld [vmem:[#allocation10 + $0x1c] sm:$0xf]
    %v323 = vld [vmem:[#allocation10 + $0x20] sm:$0xf]
    %v324 = vld [vmem:[#allocation10 + $0x24] sm:$0xf]
    %v325 = vld [vmem:[#allocation10 + $0x28] sm:$0xf]
    %v326 = vld [vmem:[#allocation10 + $0x2c] sm:$0xf]
    %v327 = vld [vmem:[#allocation10 + $0x30] sm:$0xf]
    %v328 = vld [vmem:[#allocation10 + $0x34] sm:$0xf]
    %v329 = vld [vmem:[#allocation10 + $0x38] sm:$0xf]
    %v330 = vld [vmem:[#allocation10 + $0x3c] sm:$0xf]
    %v331 = vld [vmem:[#allocation11] sm:$0x1]
    %v333 = vperm.slane %v331, 0
    %v351 = vunpack.c.l.b16 %v315
    %v352 = vunpack.c.l.b16 %v316
    %v353 = vunpack.c.l.b16 %v317
    %v354 = vunpack.c.l.b16 %v318
    %v355 = vunpack.c.l.b16 %v319
    %v356 = vunpack.c.l.b16 %v320
    %v357 = vunpack.c.l.b16 %v321
    %v358 = vunpack.c.l.b16 %v322
    %v359 = vunpack.c.l.b16 %v323
    %v360 = vunpack.c.l.b16 %v324
    %v361 = vunpack.c.l.b16 %v325
    %v362 = vunpack.c.l.b16 %v326
    %v363 = vunpack.c.l.b16 %v327
    %v364 = vunpack.c.l.b16 %v328
    %v365 = vunpack.c.l.b16 %v329
    %v366 = vunpack.c.l.b16 %v330
    %v367 = vpack.c.b16 %v352, %v351
    %v368 = vpack.c.b16 %v354, %v353
    %v369 = vpack.c.b16 %v356, %v355
    %v370 = vpack.c.b16 %v358, %v357
    %v371 = vpack.c.b16 %v360, %v359
    %v372 = vpack.c.b16 %v362, %v361
    %v373 = vpack.c.b16 %v364, %v363
    %v374 = vpack.c.b16 %v366, %v365
    %383 = vmatpush.bf16.msra.mxu0 %v374
    %384 = vmatpush.bf16.msra.mxu0 %v373
    %385 = vmatpush.bf16.msra.mxu0 %v372
    %386 = vmatpush.bf16.msra.mxu0 %v371
    %387 = vmatpush.bf16.msra.mxu0 %v370
    %388 = vmatpush.bf16.msra.mxu0 %v369
    %389 = vmatpush.bf16.msra.mxu0 %v368
    %390 = vmatpush.bf16.msra.mxu0 %v367
    %391 = vmatmul.bf16.gmra.mxu0 %v314
    %v392 = vpop.f32.mrf.mxu0
    %v393 = vadd.f32 %v333, %v392
    %v394 = vpop.f32.mrf.mxu0
    %395 = vdwg.mxu0
    %v396 = vmin.f32 %v393, 20.0
    %v397 = vmul.f32 %v396, 1.442695
    %v398 = vpow.pop %v397
    %v399 = vadd.f32 %v398, 2.0
    %v400 = vmul.f32 %v398, %v399
    %v401 = vadd.f32 %v400, 2.0
    %v402 = vrcp.pop %v401
    %v403 = vmul.f32 %v401, %v402
    %v404 = vsub.f32 1.0, %v403
    %v405 = vmul.f32 %v402, %v404
    %v406 = vadd.f32 %v402, %v405
    %vm407 = vweird.f32 %v401
    %vm408 = vweird.f32 %v402
    %vm409 = vmor %vm407, %vm408
    %v410 = vsel %vm409, %v402, %v406
    %v411 = vand.u32 2147483647, %v401
    %vm412 = vcmp.eq.f32.partialorder %v411, 8.507059e+37
    %v413 = vand.u32 %v401, 2147483648
    %v414 = vor.u32 1.1754944e-38, %v413
    %v415 = vsel %vm412, %v414, %v410
    %v416 = vmul.f32 %v400, %v415
    %v417 = vmul.f32 %v393, %v416
    %v418 = vmin.f32 %v417, 6.0
    %v419 = vld [vmem:[%s9] sm:$0xf]
    %v420 = vpack.c.bf16 %v418, %v418
    %v421 = vld [vmem:[#allocation2] sm:$0x1]
    %v423 = vperm.slane %v421, 0
    %424 = vset.pattern.permute.xlu0 0
    %425 = vperm.xlu0 %424, %v423
    %v426 = vpop.permute.xlu0 %425
    %428 = vmatpush.bf16.xpose.msra.mxu0 0
    %429 = vmatpush.bf16.xpose.msra.mxu0 0
    %430 = vmatpush.bf16.xpose.msra.mxu0 0
    %431 = vmatpush.bf16.xpose.msra.mxu0 0
    %432 = vmatpush.bf16.xpose.msra.mxu0 0
    %433 = vmatpush.bf16.xpose.msra.mxu0 0
    %434 = vmatpush.bf16.xpose.msra.mxu0 0
    %435 = vmatpush.bf16.xpose.msra.mxu0 %v420
    %436 = vmatmul.bf16.gmra.mxu0 %v419
    %v437 = vpop.f32.mrf.mxu0
    %v438 = vadd.f32 %v426, %v437
    %v439 = vpop.f32.mrf.mxu0
    %440 = vdwg.mxu0
    %vm441 = vcmask 64512
    %442 = vst.msk [vmem:[%s11] sm:$0xff] %vm441, %v438
    // Predicated region
    $region70: #{soft_q_forward.1} parent=1 // pred_check
      _
    $region71: #{soft_q_forward.1} parent=1 // pred_check_branch
      %444 = sbr.rel (0) target = $region73
    $region72: #{soft_q_forward.1} parent=1 // pred_region
      _
    $region73: #{soft_q_forward.1} parent=1 // pred_fallthru
      _
    // Predicated region
    $region74: #{soft_q_forward.1} parent=1 // pred_check
      _
    $region75: #{soft_q_forward.1} parent=1 // pred_check_branch
      %446 = sbr.rel (0) target = $region77
    $region76: #{soft_q_forward.1} parent=1 // pred_region
      _
    $region77: #{soft_q_forward.1} parent=1 // pred_fallthru
      _
    %447 = vsyncpa [#allocation4], 1
    %448 = vsyncpa [#allocation6], 1
    %449 = vsyncpa [#allocation9], 1
    %450 = vsyncpa [#allocation12], 1

</llo_original>
